<compile_context>
chip_gen: v7x
topology: tpu7x:2x2x1
jax: 0.10.0
libtpu: 0.0.40
codegen_flags: <defaults>
</compile_context>

<pallas_src>
import functools

import jax
import jax.numpy as jnp
from jax import lax
from jax.experimental import pallas as pl
from jax.experimental.pallas import tpu as pltpu

VOCAB_SIZE = 65  # e.g. tiny-shakespeare character set size


def _logits_kernel(idx_ref, table_ref, logits_ref):
    # idx_ref: (TM, 1) int32, table_ref: (Vp, Vp) f32, logits_ref: (TM, Vp) f32
    tm, vp = logits_ref.shape
    col = lax.broadcasted_iota(jnp.int32, (tm, vp), 1)
    onehot = (col == idx_ref[...]).astype(jnp.float32)
    logits_ref[...] = jnp.dot(
        onehot, table_ref[...], preferred_element_type=jnp.float32
    )


def _ce_rows(idx_ref, tgt_ref, table_ref, tm, vp, n_total, vocab):
    """Shared body: returns (logits (TM, Vp), per-row loss (TM, 1))."""
    col = lax.broadcasted_iota(jnp.int32, (tm, vp), 1)

    # Embedding lookup as one-hot matmul (MXU).
    onehot = (col == idx_ref[...]).astype(jnp.float32)
    logits = jnp.dot(onehot, table_ref[...], preferred_element_type=jnp.float32)

    # Log-softmax over the real vocab only (padded lanes masked out).
    neg_big = jnp.float32(-1e30)
    masked = jnp.where(col < vocab, logits, neg_big)
    m = jnp.max(masked, axis=-1, keepdims=True)
    z = masked - m
    lse = jnp.log(jnp.sum(jnp.exp(z), axis=-1, keepdims=True))
    picked = jnp.sum(
        jnp.where(col == tgt_ref[...], z, 0.0), axis=-1, keepdims=True
    )

    # Per-row NLL; rows beyond the true N (tile padding) contribute 0.
    row = lax.broadcasted_iota(jnp.int32, (tm, 1), 0) + pl.program_id(0) * tm
    row_loss = jnp.where(row < n_total, lse - picked, 0.0)
    return logits, row_loss


def _logits_loss_kernel(idx_ref, tgt_ref, table_ref, logits_ref, rowloss_ref,
                        *, n_total, vocab):
    tm, vp = logits_ref.shape
    logits, row_loss = _ce_rows(idx_ref, tgt_ref, table_ref, tm, vp,
                                n_total, vocab)
    logits_ref[...] = logits
    rowloss_ref[...] = row_loss


def _loss_only_kernel(idx_ref, tgt_ref, table_ref, rowloss_ref,
                      *, n_total, vocab):
    tm = rowloss_ref.shape[0]
    vp = table_ref.shape[1]
    _, row_loss = _ce_rows(idx_ref, tgt_ref, table_ref, tm, vp,
                           n_total, vocab)
    rowloss_ref[...] = row_loss


@functools.partial(jax.jit, static_argnames=("return_logits", "block_m"))
def bigram_forward(idx, token_embedding_table, targets=None, *,
                   return_logits=True, block_m=512):
    """Forward pass of BigramLanguageModel.

    Returns (logits, loss):
      - targets is None: logits has shape (B, T, V), loss is None
      - targets given:   logits has shape (B*T, V) (or None if
                         return_logits=False), loss is a scalar
    """
    B, T = idx.shape
    V = token_embedding_table.shape[0]
    N = B * T

    # Lane-dense vocab padding and token-dim tiling.
    Vp = pl.cdiv(V, 128) * 128
    tm = min(block_m, pl.cdiv(N, 8) * 8)
    n_pad = pl.cdiv(N, tm) * tm
    grid = (n_pad // tm,)

    table_p = (
        jnp.zeros((Vp, Vp), jnp.float32)
        .at[:V, :V]
        .set(token_embedding_table.astype(jnp.float32))
    )
    idx_flat = (
        jnp.zeros((n_pad, 1), jnp.int32)
        .at[:N, 0]
        .set(idx.reshape(N).astype(jnp.int32))
    )

    tok_spec = pl.BlockSpec((tm, 1), lambda i: (i, 0))
    table_spec = pl.BlockSpec((Vp, Vp), lambda i: (0, 0))   # resident in VMEM
    logits_spec = pl.BlockSpec((tm, Vp), lambda i: (i, 0))
    rowloss_spec = pl.BlockSpec((tm, 1), lambda i: (i, 0))

    cparams = pltpu.CompilerParams(
        dimension_semantics=("parallel",),
        vmem_limit_bytes=32 * 1024 * 1024,
    )

    if targets is None:
        logits_p = pl.pallas_call(
            _logits_kernel,
            out_shape=jax.ShapeDtypeStruct((n_pad, Vp), jnp.float32),
            grid=grid,
            in_specs=[tok_spec, table_spec],
            out_specs=logits_spec,
            compiler_params=cparams,
        )(idx_flat, table_p)
        return logits_p[:N, :V].reshape(B, T, V), None

    tgt_flat = (
        jnp.zeros((n_pad, 1), jnp.int32)
        .at[:N, 0]
        .set(targets.reshape(N).astype(jnp.int32))
    )

    if return_logits:
        kernel = functools.partial(_logits_loss_kernel, n_total=N, vocab=V)
        logits_p, row_losses = pl.pallas_call(
            kernel,
            out_shape=(
                jax.ShapeDtypeStruct((n_pad, Vp), jnp.float32),
                jax.ShapeDtypeStruct((n_pad, 1), jnp.float32),
            ),
            grid=grid,
            in_specs=[tok_spec, tok_spec, table_spec],
            out_specs=(logits_spec, rowloss_spec),
            compiler_params=cparams,
        )(idx_flat, tgt_flat, table_p)
        loss = jnp.sum(row_losses) / jnp.float32(N)
        return logits_p[:N, :V], loss

    # Loss-only path: skip the (N, Vp) logits HBM writeback entirely.
    kernel = functools.partial(_loss_only_kernel, n_total=N, vocab=V)
    row_losses = pl.pallas_call(
        kernel,
        out_shape=jax.ShapeDtypeStruct((n_pad, 1), jnp.float32),
        grid=grid,
        in_specs=[tok_spec, tok_spec, table_spec],
        out_specs=rowloss_spec,
        compiler_params=cparams,
    )(idx_flat, tgt_flat, table_p)
    loss = jnp.sum(row_losses) / jnp.float32(N)
    return None, loss


# TODO(synk): generate() uses torch.multinomial sampling in a host-side
# autoregressive loop; it is not part of the forward kernel and is omitted.


if __name__ == "__main__":
    key = jax.random.PRNGKey(0)
    k_table, k_idx, k_tgt = jax.random.split(key, 3)

    B, T = 2, 8
    # nn.Embedding(vocab_size, vocab_size) init ~ N(0, 1)
    token_embedding_table = jax.random.normal(
        k_table, (VOCAB_SIZE, VOCAB_SIZE), dtype=jnp.float32
    )
    idx = jax.random.randint(k_idx, (B, T), 0, VOCAB_SIZE, dtype=jnp.int32)
    targets = jax.random.randint(k_tgt, (B, T), 0, VOCAB_SIZE, dtype=jnp.int32)

    # Pure-JAX reference.
    ref_logits = token_embedding_table[idx].reshape(B * T, VOCAB_SIZE)
    ref_logz = ref_logits - jax.scipy.special.logsumexp(
        ref_logits, axis=-1, keepdims=True
    )
    ref_loss = -jnp.mean(ref_logz[jnp.arange(B * T), targets.reshape(-1)])

    # Path with targets: logits (B*T, V), scalar loss.
    logits, loss = bigram_forward(idx, token_embedding_table, targets)
    (logits, loss) = jax.block_until_ready((logits, loss))
    assert logits.shape == (B * T, VOCAB_SIZE)
    assert jnp.allclose(logits, ref_logits, atol=1e-5)
    assert jnp.allclose(loss, ref_loss, atol=1e-5)

    # Loss-only path (no logits HBM writeback).
    none_logits, loss_only = bigram_forward(
        idx, token_embedding_table, targets, return_logits=False
    )
    loss_only = jax.block_until_ready(loss_only)
    assert none_logits is None
    assert jnp.allclose(loss_only, ref_loss, atol=1e-5)

    # Path without targets: logits (B, T, V), loss None.
    logits_nt, loss_nt = bigram_forward(idx, token_embedding_table, None)
    logits_nt = jax.block_until_ready(logits_nt)
    assert loss_nt is None and logits_nt.shape == (B, T, VOCAB_SIZE)
    assert jnp.allclose(
        logits_nt.reshape(B * T, VOCAB_SIZE), ref_logits, atol=1e-5
    )

    print("KERNEL_OK")
</pallas_src>

<mosaic_0001>
module attributes {stable_mosaic.version = 11 : i64} {
  func.func @_logits_loss_kernel(%arg0: i32, %arg1: memref<16x1xi32, #tpu.memory_space<vmem>>, %arg2: memref<16x1xi32, #tpu.memory_space<vmem>>, %arg3: memref<128x128xf32, #tpu.memory_space<vmem>>, %arg4: memref<16x128xf32, #tpu.memory_space<vmem>>, %arg5: memref<16x1xf32, #tpu.memory_space<vmem>>) attributes {dimension_semantics = [#tpu.dimension_semantics<parallel>], iteration_bounds = array<i64: 1>, scalar_prefetch = 0 : i64, scratch_operands = 0 : i64, tpu.core_type = #tpu.core_type<tc>, window_params = [{transform_indices = @transform_0, window_bounds = array<i64: 16, 1>}, {transform_indices = @transform_1, window_bounds = array<i64: 16, 1>}, {pipeline_mode = #tpu.pipeline_mode<synchronous>, transform_indices = @transform_2, window_bounds = array<i64: 128, 128>}, {transform_indices = @transform_3, window_bounds = array<i64: 16, 128>}, {transform_indices = @transform_4, window_bounds = array<i64: 16, 1>}]} {
    %0 = tpu.iota {dimensions = array<i32: 1>} : vector<16x128xi32>
    %c0 = arith.constant 0 : index
    %c0_0 = arith.constant 0 : index
    %1 = vector.load %arg1[%c0, %c0_0] : memref<16x1xi32, #tpu.memory_space<vmem>>, vector<16x1xi32>
    %2 = vector.broadcast %1 : vector<16x1xi32> to vector<16x128xi32>
    %3 = arith.cmpi eq, %0, %2 : vector<16x128xi32>
    %4 = arith.extui %3 : vector<16x128xi1> to vector<16x128xi32>
    %5 = arith.sitofp %4 : vector<16x128xi32> to vector<16x128xf32>
    %c0_1 = arith.constant 0 : index
    %c0_2 = arith.constant 0 : index
    %6 = vector.load %arg3[%c0_1, %c0_2] : memref<128x128xf32, #tpu.memory_space<vmem>>, vector<128x128xf32>
    %cst = arith.constant dense<0.000000e+00> : vector<16x128xf32>
    %7 = tpu.matmul %5, %6, %cst {dimension_numbers = #tpu.dot_dimension_numbers<[1], [0], [0], [1], [0, 0, 1, 1], [], []>} : vector<16x128xf32>, vector<128x128xf32>, vector<16x128xf32> -> vector<16x128xf32>
    %c65_i32 = arith.constant 65 : i32
    %8 = vector.broadcast %c65_i32 : i32 to vector<16x128xi32>
    %9 = arith.cmpi slt, %0, %8 : vector<16x128xi32>
    %cst_3 = arith.constant -1.000000e+30 : f32
    %10 = vector.broadcast %cst_3 : f32 to vector<16x128xf32>
    %11 = arith.select %9, %7, %10 : vector<16x128xi1>, vector<16x128xf32>
    %cst_4 = arith.constant dense<0xFF800000> : vector<16xf32>
    %12 = vector.multi_reduction <maximumf>, %11, %cst_4 [1] : vector<16x128xf32> to vector<16xf32>
    %13 = vector.shape_cast %12 : vector<16xf32> to vector<16x1xf32>
    %14 = vector.broadcast %13 : vector<16x1xf32> to vector<16x128xf32>
    %15 = arith.subf %11, %14 : vector<16x128xf32>
    %16 = math.exp %15 : vector<16x128xf32>
    %cst_5 = arith.constant dense<0.000000e+00> : vector<16xf32>
    %17 = vector.multi_reduction <add>, %16, %cst_5 [1] : vector<16x128xf32> to vector<16xf32>
    %18 = vector.shape_cast %17 : vector<16xf32> to vector<16x1xf32>
    %19 = math.log %18 : vector<16x1xf32>
    %c0_6 = arith.constant 0 : index
    %c0_7 = arith.constant 0 : index
    %20 = vector.load %arg2[%c0_6, %c0_7] : memref<16x1xi32, #tpu.memory_space<vmem>>, vector<16x1xi32>
    %21 = vector.broadcast %20 : vector<16x1xi32> to vector<16x128xi32>
    %22 = arith.cmpi eq, %0, %21 : vector<16x128xi32>
    %cst_8 = arith.constant 0.000000e+00 : f32
    %23 = vector.broadcast %cst_8 : f32 to vector<16x128xf32>
    %24 = arith.select %22, %15, %23 : vector<16x128xi1>, vector<16x128xf32>
    %cst_9 = arith.constant dense<0.000000e+00> : vector<16xf32>
    %25 = vector.multi_reduction <add>, %24, %cst_9 [1] : vector<16x128xf32> to vector<16xf32>
    %26 = vector.shape_cast %25 : vector<16xf32> to vector<16x1xf32>
    %27 = tpu.iota {dimensions = array<i32: 0>} : vector<16x1xi32>
    %c16_i32 = arith.constant 16 : i32
    %28 = arith.muli %arg0, %c16_i32 : i32
    %29 = vector.broadcast %28 : i32 to vector<16x1xi32>
    %30 = arith.addi %27, %29 : vector<16x1xi32>
    %c16_i32_10 = arith.constant 16 : i32
    %31 = vector.broadcast %c16_i32_10 : i32 to vector<16x1xi32>
    %32 = arith.cmpi slt, %30, %31 : vector<16x1xi32>
    %33 = arith.subf %19, %26 : vector<16x1xf32>
    %cst_11 = arith.constant 0.000000e+00 : f32
    %34 = vector.broadcast %cst_11 : f32 to vector<16x1xf32>
    %35 = arith.select %32, %33, %34 : vector<16x1xi1>, vector<16x1xf32>
    %c0_12 = arith.constant 0 : index
    %c0_13 = arith.constant 0 : index
    %36 = vector.load %arg4[%c0_12, %c0_13] : memref<16x128xf32, #tpu.memory_space<vmem>>, vector<16x128xf32>
    tpu.vector_store %arg4[%c0_12, %c0_13], %7 {strides = array<i32>} : memref<16x128xf32, #tpu.memory_space<vmem>>, vector<16x128xf32>,
    %c0_14 = arith.constant 0 : index
    %c0_15 = arith.constant 0 : index
    %37 = vector.load %arg5[%c0_14, %c0_15] : memref<16x1xf32, #tpu.memory_space<vmem>>, vector<16x1xf32>
    tpu.vector_store %arg5[%c0_14, %c0_15], %35 {strides = array<i32>} : memref<16x1xf32, #tpu.memory_space<vmem>>, vector<16x1xf32>,
    return
  }
  func.func @transform_0(%arg0: i32) -> (i32, i32) {
    %c0_i32 = arith.constant 0 : i32
    %c0_i32_0 = arith.constant 0 : i32
    return %arg0, %c0_i32 : i32, i32
  }
  func.func @transform_1(%arg0: i32) -> (i32, i32) {
    %c0_i32 = arith.constant 0 : i32
    %c0_i32_0 = arith.constant 0 : i32
    return %arg0, %c0_i32 : i32, i32
  }
  func.func @transform_2(%arg0: i32) -> (i32, i32) {
    %c0_i32 = arith.constant 0 : i32
    %c0_i32_0 = arith.constant 0 : i32
    %c0_i32_1 = arith.constant 0 : i32
    return %c0_i32, %c0_i32_0 : i32, i32
  }
  func.func @transform_3(%arg0: i32) -> (i32, i32) {
    %c0_i32 = arith.constant 0 : i32
    %c0_i32_0 = arith.constant 0 : i32
    return %arg0, %c0_i32 : i32, i32
  }
  func.func @transform_4(%arg0: i32) -> (i32, i32) {
    %c0_i32 = arith.constant 0 : i32
    %c0_i32_0 = arith.constant 0 : i32
    return %arg0, %c0_i32 : i32, i32
  }
}

</mosaic_0001>

<llo_original>
// kernel: bigram_forward.1
$region0: #{bigram_forward.1}
  #allocation0 [shape = 'u32[]', space=smem, size = 0x4, offset = 0x4, fixed_abs, tag = 'smem constant byte address 0x4 - core index']
  #allocation1 [shape = 'u32[144,128]{1,0:T(1,128)}', space=vmem, size = 0x12000, scoped, tag = 'internal scratch']
  %s0 = inlined_call_operand.vmem [shape: s32[16,1], index: 0, kind: input, shape index: {}]
  %s1 = inlined_call_operand.vmem [shape: s32[16,1], index: 1, kind: input, shape index: {}]
  %s2 = inlined_call_operand.vmem [shape: f32[128,128], index: 2, kind: input, shape index: {}]
  %s3 = inlined_call_operand.hbm [shape: f32[16,128], index: 3, kind: output, shape index: {0}]
  %s4 = inlined_call_operand.vmem [shape: f32[16,1], index: 4, kind: output, shape index: {1}]
  %5 = xla_tuple %s3, %s4
  %s6 = sld [smem:[#allocation0]]
  $region30: #{bigram_forward.1} parent=0
    _
  %s8 = ssub.s32 1, %s6
  %s9 = scalar_select 0, %s8, %s6
  $region1: #{bigram_forward.1} parent=0
    #allocation2 [shape = 'u8[8192]{0}', space=vmem, size = 0x2000, scoped, tag = 'output window, operand 0, single buffered']
    #allocation3 [shape = 's32[1]{0}', space=sflag, size = 0x4, scoped, tag = 'scoped memory for bigram_forward.1']
    %10 = vsyncpa [#allocation3], 0
    // Predicated region
    $region2: #{bigram_forward.1} parent=1 // pred_check
      _
    $region3: #{bigram_forward.1} parent=1 // pred_check_branch
      %12 = sbr.rel (0) target = $region5
    $region4: #{bigram_forward.1} parent=1 // pred_region
      _
    $region5: #{bigram_forward.1} parent=1 // pred_fallthru
      _
    // Predicated region
    $region6: #{bigram_forward.1} parent=1 // pred_check
      _
    $region7: #{bigram_forward.1} parent=1 // pred_check_branch
      %14 = sbr.rel (0) target = $region9
    $region8: #{bigram_forward.1} parent=1 // pred_region
      _
    $region9: #{bigram_forward.1} parent=1 // pred_fallthru
      _
    // Predicated region
    $region10: #{bigram_forward.1} parent=1 // pred_check
      _
    $region11: #{bigram_forward.1} parent=1 // pred_check_branch
      %16 = sbr.rel (0) target = $region13
    $region12: #{bigram_forward.1} parent=1 // pred_region
      _
    $region13: #{bigram_forward.1} parent=1 // pred_fallthru
      _
    %v17 = vlaneseq
    %v18 = vand.u32 %v17, 127
    %v19 = vld [vmem:[%s0] sm:$0xff]
    %v20 = vld [vmem:[%s0 + $0x8] sm:$0xff]
    %21 = vset.pattern.permute.xlu0 0
    %22 = vperm.xlu0 %21, %v19
    %v23 = vpop.permute.xlu0 %22
    %24 = vset.pattern.permute.xlu0 0
    %25 = vperm.xlu0 %24, %v20
    %v26 = vpop.permute.xlu0 %25
    %vm27 = vcmp.eq.s32.totalorder %v18, %v23
    %vm28 = vcmp.eq.s32.totalorder %v18, %v26
    %v29 = vsel %vm27, 1, 0
    %v30 = vsel %vm28, 1, 0
    %v31 = vcvt.s32.f32 %v29
    %v32 = vcvt.s32.f32 %v30
    %v33 = vld [vmem:[%s2] sm:$0xff]
    %v34 = vld [vmem:[%s2 + $0x8] sm:$0xff]
    %v35 = vld [vmem:[%s2 + $0x10] sm:$0xff]
    %v36 = vld [vmem:[%s2 + $0x18] sm:$0xff]
    %v37 = vld [vmem:[%s2 + $0x20] sm:$0xff]
    %v38 = vld [vmem:[%s2 + $0x28] sm:$0xff]
    %v39 = vld [vmem:[%s2 + $0x30] sm:$0xff]
    %v40 = vld [vmem:[%s2 + $0x38] sm:$0xff]
    %v41 = vld [vmem:[%s2 + $0x40] sm:$0xff]
    %v42 = vld [vmem:[%s2 + $0x48] sm:$0xff]
    %v43 = vld [vmem:[%s2 + $0x50] sm:$0xff]
    %v44 = vld [vmem:[%s2 + $0x58] sm:$0xff]
    %v45 = vld [vmem:[%s2 + $0x60] sm:$0xff]
    %v46 = vld [vmem:[%s2 + $0x68] sm:$0xff]
    %v47 = vld [vmem:[%s2 + $0x70] sm:$0xff]
    %v48 = vld [vmem:[%s2 + $0x78] sm:$0xff]
    %49 = vmatprep.subr.mxu0 0.0
    %50 = vmatpush1.msra.mxu0 %v33
    %51 = vmatprep.subr.mxu0 0.0
    %52 = vmatpush1.msra.mxu0 %v34
    %53 = vmatprep.subr.mxu0 0.0
    %54 = vmatpush1.msra.mxu0 %v35
    %55 = vmatprep.subr.mxu0 0.0
    %56 = vmatpush1.msra.mxu0 %v36
    %57 = vmatprep.subr.mxu0 0.0
    %58 = vmatpush1.msra.mxu0 %v37
    %59 = vmatprep.subr.mxu0 0.0
    %60 = vmatpush1.msra.mxu0 %v38
    %61 = vmatprep.subr.mxu0 0.0
    %62 = vmatpush1.msra.mxu0 %v39
    %63 = vmatprep.subr.mxu0 0.0
    %64 = vmatpush1.msra.mxu0 %v40
    %65 = vmatprep.subr.mxu0 0.0
    %66 = vmatpush1.msra.mxu0 %v41
    %67 = vmatprep.subr.mxu0 0.0
    %68 = vmatpush1.msra.mxu0 %v42
    %69 = vmatprep.subr.mxu0 0.0
    %70 = vmatpush1.msra.mxu0 %v43
    %71 = vmatprep.subr.mxu0 0.0
    %72 = vmatpush1.msra.mxu0 %v44
    %73 = vmatprep.subr.mxu0 0.0
    %74 = vmatpush1.msra.mxu0 %v45
    %75 = vmatprep.subr.mxu0 0.0
    %76 = vmatpush1.msra.mxu0 %v46
    %77 = vmatprep.subr.mxu0 0.0
    %78 = vmatpush1.msra.mxu0 %v47
    %79 = vmatprep.subr.mxu0 0.0
    %80 = vmatpush1.msra.mxu0 %v48
    %81 = vmatprep.subr.mxu0 0.0
    %82 = vmatpush1.msra.mxu0 0.0
    %83 = vmatprep.subr.mxu0 0.0
    %84 = vmatpush1.msra.mxu0 0.0
    %85 = vmatprep.subr.mxu0 0.0
    %86 = vmatpush1.msra.mxu0 0.0
    %87 = vmatprep.subr.mxu0 0.0
    %88 = vmatpush1.msra.mxu0 0.0
    %89 = vmatprep.subr.mxu0 0.0
    %90 = vmatpush1.msra.mxu0 0.0
    %91 = vmatprep.subr.mxu0 0.0
    %92 = vmatpush1.msra.mxu0 0.0
    %93 = vmatprep.subr.mxu0 0.0
    %94 = vmatpush1.msra.mxu0 0.0
    %95 = vmatprep.subr.mxu0 0.0
    %96 = vmatpush1.msra.mxu0 0.0
    %97 = vmatprep.subr.mxu0 0.0
    %98 = vmatpush1.msra.mxu0 0.0
    %99 = vmatprep.subr.mxu0 0.0
    %100 = vmatpush1.msra.mxu0 0.0
    %101 = vmatprep.subr.mxu0 0.0
    %102 = vmatpush1.msra.mxu0 0.0
    %103 = vmatprep.subr.mxu0 0.0
    %104 = vmatpush1.msra.mxu0 0.0
    %105 = vmatprep.subr.mxu0 0.0
    %106 = vmatpush1.msra.mxu0 0.0
    %107 = vmatprep.subr.mxu0 0.0
    %108 = vmatpush1.msra.mxu0 0.0
    %109 = vmatprep.subr.mxu0 0.0
    %110 = vmatpush1.msra.mxu0 0.0
    %111 = vmatprep.subr.mxu0 0.0
    %112 = vmatpush1.msra.mxu0 0.0
    %113 = vmatprep.mubr.f32.mxu0 0.0
    %114 = vmatmul.mubr.f32.gmra.mrb[0].mxu0 %v31
    %v115 = vpop.f32.mrb[0].mxu0
    %v116 = vadd.f32 0.0, %v115
    %v117 = vpop.f32.mrb[0].mxu0
    %118 = vmatprep.mubr.f32.mxu0 0.0
    %119 = vmatmul.mubr.f32.gmra.mrb[0].mxu0 %v32
    %v120 = vpop.f32.mrb[0].mxu0
    %v121 = vadd.f32 0.0, %v120
    %v122 = vpop.f32.mrb[0].mxu0
    %123 = vdwg.mxu0
    %vm124 = vcmp.lt.s32.totalorder %v18, 65
    %v125 = vsel %vm124, %v116, -1e+30
    %v126 = vsel %vm124, %v121, -1e+30
    %127 = vmax.xlane.f32.xlu0 %v125
    %v128 = vpop.xlane.xlu0 %127
    %129 = vmax.xlane.f32.xlu0 %v126
    %v130 = vpop.xlane.xlu0 %129
    %v131 = vsub.f32 %v125, %v128
    %v132 = vsub.f32 %v126, %v130
    %v133 = vmul.f32 %v131, 1.442695
    %v134 = vpow.pop %v133
    %v135 = vmul.f32 %v132, 1.442695
    %v136 = vpow.pop %v135
    %137 = vadd.xlane.f32.xlu0 %v134
    %v138 = vpop.xlane.xlu0 %137
    %139 = vadd.xlane.f32.xlu0 %v136
    %v140 = vpop.xlane.xlu0 %139
    %v141 = vlog2.pop %v138
    %v142 = vmul.f32 %v141, 0.6931472
    %v143 = vlog2.pop %v140
    %v144 = vmul.f32 %v143, 0.6931472
    %v145 = vld [vmem:[%s1] sm:$0xff]
    %v146 = vld [vmem:[%s1 + $0x8] sm:$0xff]
    %147 = vset.pattern.permute.xlu0 0
    %148 = vperm.xlu0 %147, %v145
    %v149 = vpop.permute.xlu0 %148
    %150 = vset.pattern.permute.xlu0 0
    %151 = vperm.xlu0 %150, %v146
    %v152 = vpop.permute.xlu0 %151
    %vm153 = vcmp.eq.s32.totalorder %v18, %v149
    %vm154 = vcmp.eq.s32.totalorder %v18, %v152
    %v155 = vsel %vm153, %v131, 0.0
    %v156 = vsel %vm154, %v132, 0.0
    %157 = vadd.xlane.f32.xlu0 %v155
    %v158 = vpop.xlane.xlu0 %157
    %159 = vadd.xlane.f32.xlu0 %v156
    %v160 = vpop.xlane.xlu0 %159
    %v161 = vlaneseq
    %v162 = vshrl.u32 %v161, 7
    %v163 = vadd.s32 %v162, 8
    %s164 = smul.u32 0, 16
    %v165 = vstv %s164
    %v166 = vadd.s32 %v162, %v165
    %v167 = vadd.s32 %v163, %v165
    %vm168 = vcmp.lt.s32.totalorder %v166, 16
    %vm169 = vcmp.lt.s32.totalorder %v167, 16
    %v170 = vsub.f32 %v142, %v158
    %v171 = vsub.f32 %v144, %v160
    %v172 = vsel %vm168, %v170, 0.0
    %v173 = vsel %vm169, %v171, 0.0
    %174 = vst [vmem:[#allocation2] sm:$0xff] %v116
    %175 = vst [vmem:[#allocation2 + $0x8] sm:$0xff] %v121
    %vm176 = vcmask 7168
    %177 = vst.msk [vmem:[%s4] sm:$0xff] %vm176, %v172
    %178 = vst.msk [vmem:[%s4 + $0x8] sm:$0xff] %vm176, %v173
    // Predicated region
    $region14: #{bigram_forward.1} parent=1 // pred_check
      _
    $region15: #{bigram_forward.1} parent=1 // pred_check_branch
      %180 = sbr.rel (0) target = $region17
    $region16: #{bigram_forward.1} parent=1 // pred_region
      %s182 = ssub.s32 256, 256
      %183 = vsyncadd [#allocation3], %s182
      %s184 = sshll.u32 [#allocation2], 4
      %s185 = int_to_ptr.vmem [resolvable:$true] %s184
      %190 = dma.vmem_to_hbm [thread:$0]  %s185, 256, %s3, [#allocation3], 128, 128, 8
    $region17: #{bigram_forward.1} parent=1 // pred_fallthru
      _
    // Predicated region
    $region18: #{bigram_forward.1} parent=1 // pred_check
      _
    $region19: #{bigram_forward.1} parent=1 // pred_check_branch
      %192 = sbr.rel (0) target = $region21
    $region20: #{bigram_forward.1} parent=1 // pred_region
      _
    $region21: #{bigram_forward.1} parent=1 // pred_fallthru
      _
    // Predicated region
    $region22: #{bigram_forward.1} parent=1 // pred_check
      _
    $region23: #{bigram_forward.1} parent=1 // pred_check_branch
      %194 = sbr.rel (0) target = $region25
    $region24: #{bigram_forward.1} parent=1 // pred_region
      %195 = dma.done [#allocation3], 256
    $region25: #{bigram_forward.1} parent=1 // pred_fallthru
      _
    // Predicated region
    $region26: #{bigram_forward.1} parent=1 // pred_check
      _
    $region27: #{bigram_forward.1} parent=1 // pred_check_branch
      %197 = sbr.rel (0) target = $region29
    $region28: #{bigram_forward.1} parent=1 // pred_region
      _
    $region29: #{bigram_forward.1} parent=1 // pred_fallthru
      _
    %198 = vsyncpa [#allocation3], 1

</llo_original>
